<compile_context>
chip_gen: v6e
topology: v6e:2x2x1
jax: 0.10.0
libtpu: 0.0.40
codegen_flags: <defaults>
</compile_context>

<pallas_src>
import jax
import jax.numpy as jnp
from jax.experimental import pallas as pl
from jax.experimental.pallas import tpu as pltpu


def _round_up(x, m):
    return ((x + m - 1) // m) * m


def _gram_aug_kernel(aug_ref, out_ref):
    """Accumulate [theta|dt] @ [theta|dt]^T over the N (lane) axis for one output.

    aug_ref: (F+1, TN) block — rows are [theta^T ; dt^T], samples on the lane axis.
    out_ref: (F+1, F+1) resident accumulator (same output block across the k axis).
    """
    @pl.when(pl.program_id(1) == 0)
    def _():
        out_ref[...] = jnp.zeros_like(out_ref)

    a = aug_ref[...]                                        # (F+1, TN), f32
    out_ref[...] += jax.lax.dot_general(                    # contract over samples (MXU)
        a, a,
        dimension_numbers=(((1,), (1,)), ((), ())),
        preferred_element_type=jnp.float32,
    )                                                       # (F+1, F+1)


def _batched_gram_aug(aug, tile_n):
    """aug: (O, F+1, N_pad) -> (O, F+1, F+1) Gram of [theta | dt] per output."""
    n_out, f1, n_pad = aug.shape
    grid = (n_out, n_pad // tile_n)
    return pl.pallas_call(
        _gram_aug_kernel,
        out_shape=jax.ShapeDtypeStruct((n_out, f1, f1), jnp.float32),
        grid=grid,
        in_specs=[pl.BlockSpec((None, f1, tile_n), lambda o, k: (o, 0, k))],
        out_specs=pl.BlockSpec((None, f1, f1), lambda o, k: (o, 0, 0)),
        compiler_params=pltpu.CompilerParams(
            dimension_semantics=("parallel", "arbitrary"),
            vmem_limit_bytes=32 * 1024 * 1024,
        ),
    )(aug)


class LeastSquaresConstraint:
    """JAX/Pallas port of deepymod `Constraint` with `fit` = least squares.

    forward(input) where input = (time_derivs, thetas):
      time_derivs: list of (n_samples, 1) arrays, one per output
      thetas:      list of (n_samples, n_features) arrays, one per output
    returns:       list of (n_features, 1) coefficient vectors
    """

    def __init__(self, tile_n=2048, ridge=1e-6):
        self.sparsity_masks = None
        self.coeff_vectors = None
        self.tile_n = tile_n          # N-tile (multiple of 128); sized for v7x 64 MiB VMEM too
        self.ridge = ridge            # tiny SPD safety term

    def _fit_stacked(self, thetas, time_derivs, masks):
        n, f = thetas[0].shape
        theta = jnp.stack([t.astype(jnp.float32) for t in thetas])              # (O, N, F)
        dt = jnp.stack([d.astype(jnp.float32) for d in time_derivs])            # (O, N, 1)
        m = jnp.stack([jnp.asarray(mk).astype(jnp.float32) for mk in masks])    # (O, F)

        # [theta | dt] with samples moved to the lane (last) axis: (O, F+1, N).
        aug = jnp.swapaxes(jnp.concatenate([theta, dt], axis=-1), 1, 2)

        # Pad N to a multiple of the lane tile (zero columns contribute nothing to the Gram).
        tile_n = min(self.tile_n, _round_up(n, 128))
        n_pad = _round_up(n, tile_n)
        if n_pad != n:
            aug = jnp.pad(aug, ((0, 0), (0, 0), (0, n_pad - n)))

        gram_aug = _batched_gram_aug(aug, tile_n)                                # (O, F+1, F+1)

        # Mask the Gram/rhs instead of theta (mathematically identical to theta[:, mask]).
        gram = gram_aug[:, :f, :f] * (m[:, :, None] * m[:, None, :])
        rhs = gram_aug[:, :f, f:] * m[:, :, None]
        # Unit diagonal on masked-out rows + tiny ridge keeps the SPD solve well posed.
        gram = gram + jax.vmap(jnp.diag)(1.0 - m) + self.ridge * jnp.eye(f, dtype=jnp.float32)[None]

        def _spd_solve(g, r):
            cf = jax.scipy.linalg.cho_factor(g, lower=True)
            return jax.scipy.linalg.cho_solve(cf, r)

        coeff = jax.vmap(_spd_solve)(gram, rhs)                                  # (O, F, 1)
        coeff = coeff * m[:, :, None]            # mirrors forward()'s `coeff * mask[:, None]`
        return [coeff[i] for i in range(coeff.shape[0])]

    def __call__(self, inputs):
        time_derivs, thetas = inputs
        if self.sparsity_masks is None:
            # Matches the PyTorch default: all-True masks created on first forward.
            self.sparsity_masks = [jnp.ones((t.shape[1],), dtype=bool) for t in thetas]

        shapes = {(t.shape, d.shape) for t, d in zip(thetas, time_derivs)}
        if len(shapes) == 1:
            coeffs = self._fit_stacked(thetas, time_derivs, self.sparsity_masks)
        else:
            # TODO(synk): ragged per-output shapes fall back to one pallas_call per output.
            coeffs = []
            for t, d, mk in zip(thetas, time_derivs, self.sparsity_masks):
                coeffs.extend(self._fit_stacked([t], [d], [mk]))
        self.coeff_vectors = coeffs
        return coeffs


if __name__ == "__main__":
    key = jax.random.PRNGKey(0)
    n_samples, n_features, n_outputs = 256, 12, 2

    thetas, time_derivs, refs = [], [], []
    for _ in range(n_outputs):
        k1, k2, key = jax.random.split(key, 3)
        theta = jax.random.normal(k1, (n_samples, n_features), dtype=jnp.float32)
        true_coeff = jax.random.normal(k2, (n_features, 1), dtype=jnp.float32)
        dt = theta @ true_coeff                                      # (n_samples, 1)
        thetas.append(theta)
        time_derivs.append(dt)
        refs.append(jnp.linalg.lstsq(theta, dt)[0])                  # pure-JAX reference

    # ---- default (all-True masks) path ----
    constraint = LeastSquaresConstraint()
    coeffs = constraint((time_derivs, thetas))
    coeffs = [jax.block_until_ready(c) for c in coeffs]
    for c, r in zip(coeffs, refs):
        assert c.shape == (n_features, 1)
        assert jnp.allclose(c, r, atol=1e-3, rtol=1e-3), (c, r)

    # ---- sparsity-masked path ----
    mask = jnp.ones((n_features,), dtype=bool).at[jnp.array([3, 7])].set(False)
    constraint_m = LeastSquaresConstraint()
    constraint_m.sparsity_masks = [mask for _ in range(n_outputs)]
    coeffs_m = constraint_m((time_derivs, thetas))
    coeffs_m = [jax.block_until_ready(c) for c in coeffs_m]
    active = jnp.where(mask)[0]
    for c, theta, dt in zip(coeffs_m, thetas, time_derivs):
        ref_active = jnp.linalg.lstsq(theta[:, mask], dt)[0]
        ref_full = jnp.zeros((n_features, 1), jnp.float32).at[active].set(ref_active)
        assert c.shape == (n_features, 1)
        assert jnp.allclose(c, ref_full, atol=1e-3, rtol=1e-3), (c, ref_full)

    print("KERNEL_OK")
</pallas_src>

<mosaic_0001>
module attributes {stable_mosaic.version = 11 : i64} {
  func.func @_gram_aug_kernel(%arg0: i32, %arg1: i32, %arg2: memref<1x13x256xf32, #tpu.memory_space<vmem>>, %arg3: memref<1x13x13xf32, #tpu.memory_space<vmem>>) attributes {dimension_semantics = [#tpu.dimension_semantics<parallel>, #tpu.dimension_semantics<arbitrary>], iteration_bounds = array<i64: 2, 1>, scalar_prefetch = 0 : i64, scratch_operands = 0 : i64, tpu.core_type = #tpu.core_type<tc>, window_params = [{transform_indices = @transform_0, window_bounds = array<i64: 1, 13, 256>}, {transform_indices = @transform_1, window_bounds = array<i64: 1, 13, 13>}]} {
    %c0_i32 = arith.constant 0 : i32
    %0 = arith.cmpi eq, %arg1, %c0_i32 : i32
    %1 = arith.extui %0 : i1 to i32
    %c0_i32_0 = arith.constant 0 : i32
    %2 = arith.cmpi ne, %1, %c0_i32_0 : i32
    scf.if %2 {
      %cst_9 = arith.constant 0.000000e+00 : f32
      %12 = vector.broadcast %cst_9 : f32 to vector<13x13xf32>
      %c0_10 = arith.constant 0 : index
      %c0_11 = arith.constant 0 : index
      %c0_12 = arith.constant 0 : index
      %13 = vector.load %arg3[%c0_10, %c0_11, %c0_12] : memref<1x13x13xf32, #tpu.memory_space<vmem>>, vector<1x13x13xf32>
      %14 = vector.shape_cast %13 : vector<1x13x13xf32> to vector<13x13xf32>
      %15 = vector.shape_cast %12 : vector<13x13xf32> to vector<1x13x13xf32>
      tpu.vector_store %arg3[%c0_10, %c0_11, %c0_12], %15 {strides = array<i32>} : memref<1x13x13xf32, #tpu.memory_space<vmem>>, vector<1x13x13xf32>,
    } else {
    }
    %c0 = arith.constant 0 : index
    %c0_1 = arith.constant 0 : index
    %c0_2 = arith.constant 0 : index
    %3 = vector.load %arg2[%c0, %c0_1, %c0_2] : memref<1x13x256xf32, #tpu.memory_space<vmem>>, vector<1x13x256xf32>
    %4 = vector.shape_cast %3 : vector<1x13x256xf32> to vector<13x256xf32>
    %c0_3 = arith.constant 0 : index
    %c0_4 = arith.constant 0 : index
    %c0_5 = arith.constant 0 : index
    %5 = vector.load %arg3[%c0_3, %c0_4, %c0_5] : memref<1x13x13xf32, #tpu.memory_space<vmem>>, vector<1x13x13xf32>
    %6 = vector.shape_cast %5 : vector<1x13x13xf32> to vector<13x13xf32>
    %cst = arith.constant dense<0.000000e+00> : vector<13x13xf32>
    %7 = tpu.matmul %4, %4, %cst {dimension_numbers = #tpu.dot_dimension_numbers<[1], [1], [0], [0], [0, 0, 1, 0], [], []>} : vector<13x256xf32>, vector<13x256xf32>, vector<13x13xf32> -> vector<13x13xf32>
    %8 = arith.addf %6, %7 : vector<13x13xf32>
    %c0_6 = arith.constant 0 : index
    %c0_7 = arith.constant 0 : index
    %c0_8 = arith.constant 0 : index
    %9 = vector.load %arg3[%c0_6, %c0_7, %c0_8] : memref<1x13x13xf32, #tpu.memory_space<vmem>>, vector<1x13x13xf32>
    %10 = vector.shape_cast %9 : vector<1x13x13xf32> to vector<13x13xf32>
    %11 = vector.shape_cast %8 : vector<13x13xf32> to vector<1x13x13xf32>
    tpu.vector_store %arg3[%c0_6, %c0_7, %c0_8], %11 {strides = array<i32>} : memref<1x13x13xf32, #tpu.memory_space<vmem>>, vector<1x13x13xf32>,
    return
  }
  func.func @transform_0(%arg0: i32, %arg1: i32) -> (i32, i32, i32) {
    %c0_i32 = arith.constant 0 : i32
    %c0_i32_0 = arith.constant 0 : i32
    return %arg0, %c0_i32, %arg1 : i32, i32, i32
  }
  func.func @transform_1(%arg0: i32, %arg1: i32) -> (i32, i32, i32) {
    %c0_i32 = arith.constant 0 : i32
    %c0_i32_0 = arith.constant 0 : i32
    %c0_i32_1 = arith.constant 0 : i32
    return %arg0, %c0_i32, %c0_i32_0 : i32, i32, i32
  }
}

</mosaic_0001>

<llo_original>
// kernel: tpu_custom_call.1
$region0: #{tpu_custom_call.1}
  #allocation0 [shape = 'u32[]', space=smem, size = 0x4, offset = 0x4, fixed_abs, tag = 'smem constant byte address 0x4 - core index']
  #allocation1 [shape = 'u32[144,128]{1,0:T(1,128)}', space=vmem, size = 0x12000, scoped, tag = 'internal scratch']
  %s0 = inlined_call_operand.vmem [shape: f32[2,13,256], index: 0, kind: input, shape index: {}]
  %s1 = inlined_call_operand.vmem [shape: f32[2,13,13], index: 1, kind: output, shape index: {}]
  %s2 = sld [smem:[#allocation0]]
  $region41: #{tpu_custom_call.1} parent=0
    _
  %s4 = ssub.s32 1, %s2
  %s5 = scalar_select 0, %s4, %s2
  loop: start=0, step=1, limit=4
  $region2: #{tpu_custom_call.1} parent=0 // loop_pre_header
    _
  $region3: #{tpu_custom_call.1} parent=0 // loop_header
    %s7 = sphi 0, %s11
    %p8 = scmp.ge.s32.totalorder %s7, 4
    %s14 = sphi 0, %s26
    %s15 = sphi 0, %s22
    %s16 = sphi 0, %s14
    %s17 = sphi 0, %s15
    %s18 = sphi 0, %s16
    %s19 = sphi 0, %s17
    %s31 = sphi 0, %s33
    %s34 = sphi 0, %s31
    %s35 = sphi 0, %s34
    %s51 = sphi 0, %s35
    %s57 = sphi 0, %s59
    %s60 = sphi 0, %s57
    %s61 = sphi 0, %s60
    %s77 = sphi 0, %s61
  $region4: #{tpu_custom_call.1} parent=0 // loop_header_branch
    %10 = sbr.rel (%p8) target = $region8
  $region5: #{tpu_custom_call.1} parent=0 // loop_body
    %s12 = ssub.s32 %s7, 1
    %s13 = ssub.s32 %s7, 2
    %s20 = sadd.s32 1, %s15
    %p21 = scmp.ge.s32.totalorder %s20, 1
    %s22 = scalar_select %p21, 0, %s20
    %s23 = sadd.s32 1, %s14
    %s24 = scalar_select %p21, %s23, %s14
    %p25 = scmp.ge.s32.totalorder %s24, 2
    %s26 = scalar_select %p25, 0, %s24
    %s27 = ssub.s32 %s14, %s26
    %s28 = ssub.s32 %s15, %s22
    %s29 = sor.u32 %s27, %s28
    %p30 = scmp.eq.s32.totalorder %s29, 0
    %s32 = sadd.s32 %s31, 1
    %s33 = scalar_select %p30, %s31, %s32
    %p36 = pneg %p30
    %p37 = scmp.eq.s32.totalorder %s7, 1
    %p38 = por %p36, %p37
    %p39 = scmp.ne.s32.totalorder %s31, %s34
    %p40 = scmp.eq.s32.totalorder %s7, 0
    %p41 = por %p39, %p40
    %p42 = scmp.ne.s32.totalorder %s31, %s34
    %p43 = scmp.eq.s32.totalorder %s12, 1
    %p44 = por %p42, %p43
    %p45 = scmp.ne.s32.totalorder %s34, %s35
    %p46 = scmp.eq.s32.totalorder %s12, 0
    %p47 = por %p45, %p46
    %p48 = scmp.ne.s32.totalorder %s34, %s35
    %p49 = scmp.eq.s32.totalorder %s13, 1
    %p50 = por %p48, %p49
    %p52 = scmp.ne.s32.totalorder %s35, %s51
    %p53 = scmp.eq.s32.totalorder %s13, 0
    %p54 = por %p52, %p53
    %s55 = ssub.s32 %s14, %s26
    %p56 = scmp.eq.s32.totalorder %s55, 0
    %s58 = sadd.s32 %s57, 1
    %s59 = scalar_select %p56, %s57, %s58
    %p62 = pneg %p56
    %p63 = scmp.eq.s32.totalorder %s7, 1
    %p64 = por %p62, %p63
    %p65 = scmp.ne.s32.totalorder %s57, %s60
    %p66 = scmp.eq.s32.totalorder %s7, 0
    %p67 = por %p65, %p66
    %p68 = scmp.ne.s32.totalorder %s57, %s60
    %p69 = scmp.eq.s32.totalorder %s12, 1
    %p70 = por %p68, %p69
    %p71 = scmp.ne.s32.totalorder %s60, %s61
    %p72 = scmp.eq.s32.totalorder %s12, 0
    %p73 = por %p71, %p72
    %p74 = scmp.ne.s32.totalorder %s60, %s61
    %p75 = scmp.eq.s32.totalorder %s13, 1
    %p76 = por %p74, %p75
    %p78 = scmp.ne.s32.totalorder %s61, %s77
    %p79 = scmp.eq.s32.totalorder %s13, 0
    %p80 = por %p78, %p79
    %p81 = scmp.le.s32.totalorder 1, %s7
    %p82 = scmp.lt.s32.totalorder %s7, 3
    %p83 = pnand %p81, %p82
    %p84 = pneg %p83
    // Predicated region
    $region9: #{tpu_custom_call.1} parent=5 // pred_check
      _
    $region10: #{tpu_custom_call.1} parent=5 // pred_check_branch
      %86 = sbr.rel (%p83) target = $region12
    $region11: #{tpu_custom_call.1} parent=5 // pred_region
      %s87 = ssub.s32 %s7, 1
    $region12: #{tpu_custom_call.1} parent=5 // pred_fallthru
      _
    %p88 = scmp.lt.s32.totalorder %s7, 2
    // Predicated region
    $region13: #{tpu_custom_call.1} parent=5 // pred_check
      %p89 = pneg %p88
    $region14: #{tpu_custom_call.1} parent=5 // pred_check_branch
      %91 = sbr.rel (%p89) target = $region16
    $region15: #{tpu_custom_call.1} parent=5 // pred_region
      // Predicated region
      $region17: #{tpu_custom_call.1} parent=15 // pred_check
        %p92 = pneg %p41
      $region18: #{tpu_custom_call.1} parent=15 // pred_check_branch
        %94 = sbr.rel (%p92) target = $region20
      $region19: #{tpu_custom_call.1} parent=15 // pred_region
        %s95 = smul.u32 2, %s15
        %p96 = scmp.lt.s32.totalorder %s14, 1
        %s97 = scalar_select %p96, %s14, 1
        %p98 = scmp.lt.s32.totalorder %s95, 1
        %s99 = scalar_select %p98, %s95, 1
        %s100 = smul.addr %s97, 4
        %s101 = sadd.s32 %s99, %s100
        %s102 = smul.addr %s101, 8
        %s103 = scalar_lea.vmem %s0, %s102
        %s104 = smul.u32 2, %s15
      $region20: #{tpu_custom_call.1} parent=15 // pred_fallthru
        _
    $region16: #{tpu_custom_call.1} parent=5 // pred_fallthru
      _
    %p105 = scmp.le.s32.totalorder 1, %s7
    %p106 = scmp.lt.s32.totalorder %s7, 3
    %p107 = pnand %p105, %p106
    %p108 = pneg %p107
    // Predicated region
    $region21: #{tpu_custom_call.1} parent=5 // pred_check
      _
    $region22: #{tpu_custom_call.1} parent=5 // pred_check_branch
      %110 = sbr.rel (%p107) target = $region24
    $region23: #{tpu_custom_call.1} parent=5 // pred_region
      %s111 = ssub.s32 %s7, 1
      %s112 = smul.u32 2, %s17
      %p113 = scmp.lt.s32.totalorder %s16, 1
      %s114 = scalar_select %p113, %s16, 1
      %p115 = scmp.lt.s32.totalorder %s112, 1
      %s116 = scalar_select %p115, %s112, 1
      %s117 = smul.addr %s114, 4
      %s118 = sadd.s32 %s116, %s117
      %s119 = smul.addr %s118, 8
      %s120 = scalar_lea.vmem %s0, %s119
      %p121 = pneg %p47
      %p122 = pneg %p44
      %p123 = pneg %p73
      %p124 = pneg %p70
      %p125 = scmp.lt.s32.totalorder %s16, 1
      %s126 = scalar_select %p125, %s16, 1
      %s127 = smul.addr %s126, 2
      %s128 = smul.addr %s127, 8
      %s129 = scalar_lea.vmem %s1, %s128
      %s130 = smul.u32 2, %s17
      %p131 = scmp.lt.s32.totalorder %s16, 1
      %s132 = scalar_select %p131, %s16, 1
      %p133 = scmp.lt.s32.totalorder %s130, 1
      %s134 = scalar_select %p133, %s130, 1
      %s135 = smul.addr %s132, 4
      %s136 = sadd.s32 %s134, %s135
      %s137 = smul.addr %s136, 8
      %s138 = scalar_lea.vmem %s0, %s137
      %s139 = smul.u32 2, %s17
      %p140 = scmp.lt.s32.totalorder %s16, 1
      %s141 = scalar_select %p140, %s16, 1
      %s142 = smul.addr %s141, 2
      %s143 = smul.addr %s142, 8
      %s144 = scalar_lea.vmem %s1, %s143
      %p145 = scmp.eq.s32.totalorder %s17, 0
      // Predicated region
      $region25: #{tpu_custom_call.1} parent=23 // pred_check
        %p146 = pneg %p145
      $region26: #{tpu_custom_call.1} parent=23 // pred_check_branch
        %148 = sbr.rel (%p146) target = $region28
      $region27: #{tpu_custom_call.1} parent=23 // pred_region
        %vm149 = vcmask 105472
        %150 = vst.msk [vmem:[%s144] sm:$0xff] %vm149, 0.0
        %vm151 = vcmask 102400
        %152 = vst.msk [vmem:[%s144 + $0x8] sm:$0x1f] %vm151, 0.0
      $region28: #{tpu_custom_call.1} parent=23 // pred_fallthru
        _
      %v153 = vld [vmem:[%s138] sm:$0xff]
      %v154 = vld [vmem:[%s138 + $0x8] sm:$0xff]
      %v155 = vld [vmem:[%s138 + $0x10] sm:$0x1f]
      %v156 = vld [vmem:[%s138 + $0x18] sm:$0x1f]
      %v157 = vld [vmem:[%s144] sm:$0xff]
      %v158 = vld [vmem:[%s144 + $0x8] sm:$0x1f]
      %159 = vmatprep.subr.mxu0 0.0
      %160 = vmatpush1.xpose.msra.mxu0 0.0
      %161 = vmatprep.subr.mxu0 0.0
      %162 = vmatpush1.xpose.msra.mxu0 0.0
      %163 = vmatprep.subr.mxu0 0.0
      %164 = vmatpush1.xpose.msra.mxu0 0.0
      %165 = vmatprep.subr.mxu0 0.0
      %166 = vmatpush1.xpose.msra.mxu0 0.0
      %167 = vmatprep.subr.mxu0 0.0
      %168 = vmatpush1.xpose.msra.mxu0 0.0
      %169 = vmatprep.subr.mxu0 0.0
      %170 = vmatpush1.xpose.msra.mxu0 0.0
      %171 = vmatprep.subr.mxu0 0.0
      %172 = vmatpush1.xpose.msra.mxu0 0.0
      %173 = vmatprep.subr.mxu0 0.0
      %174 = vmatpush1.xpose.msra.mxu0 0.0
      %175 = vmatprep.subr.mxu0 0.0
      %176 = vmatpush1.xpose.msra.mxu0 0.0
      %177 = vmatprep.subr.mxu0 0.0
      %178 = vmatpush1.xpose.msra.mxu0 0.0
      %179 = vmatprep.subr.mxu0 0.0
      %180 = vmatpush1.xpose.msra.mxu0 0.0
      %181 = vmatprep.subr.mxu0 0.0
      %182 = vmatpush1.xpose.msra.mxu0 0.0
      %183 = vmatprep.subr.mxu0 0.0
      %184 = vmatpush1.xpose.msra.mxu0 0.0
      %185 = vmatprep.subr.mxu0 0.0
      %186 = vmatpush1.xpose.msra.mxu0 0.0
      %187 = vmatprep.subr.mxu0 %v156
      %188 = vmatpush1.xpose.msra.mxu0 %v155
      %189 = vmatprep.subr.mxu0 %v154
      %190 = vmatpush1.xpose.msra.mxu0 %v153
      %191 = vmatprep.subr.mxu0 0.0
      %192 = vmatpush2.xpose.msra.mxu0 0.0
      %193 = vmatprep.subr.mxu0 0.0
      %194 = vmatpush2.xpose.msra.mxu0 0.0
      %195 = vmatprep.subr.mxu0 0.0
      %196 = vmatpush2.xpose.msra.mxu0 0.0
      %197 = vmatprep.subr.mxu0 0.0
      %198 = vmatpush2.xpose.msra.mxu0 0.0
      %199 = vmatprep.subr.mxu0 0.0
      %200 = vmatpush2.xpose.msra.mxu0 0.0
      %201 = vmatprep.subr.mxu0 0.0
      %202 = vmatpush2.xpose.msra.mxu0 0.0
      %203 = vmatprep.subr.mxu0 0.0
      %204 = vmatpush2.xpose.msra.mxu0 0.0
      %205 = vmatprep.subr.mxu0 0.0
      %206 = vmatpush2.xpose.msra.mxu0 0.0
      %207 = vmatprep.subr.mxu0 0.0
      %208 = vmatpush2.xpose.msra.mxu0 0.0
      %209 = vmatprep.subr.mxu0 0.0
      %210 = vmatpush2.xpose.msra.mxu0 0.0
      %211 = vmatprep.subr.mxu0 0.0
      %212 = vmatpush2.xpose.msra.mxu0 0.0
      %213 = vmatprep.subr.mxu0 0.0
      %214 = vmatpush2.xpose.msra.mxu0 0.0
      %215 = vmatprep.subr.mxu0 0.0
      %216 = vmatpush2.xpose.msra.mxu0 0.0
      %217 = vmatprep.subr.mxu0 0.0
      %218 = vmatpush2.xpose.msra.mxu0 0.0
      %219 = vmatprep.subr.mxu0 0.0
      %220 = vmatpush2.xpose.msra.mxu0 0.0
      %221 = vmatprep.subr.mxu0 0.0
      %222 = vmatpush2.xpose.msra.mxu0 0.0
      %223 = vmatprep.mubr.f32.mxu0 %v154
      %224 = vmatmul.mubr.f32.gmra.mxu0 %v153
      %v225 = vpop.f32.mrf.mxu0
      %v226 = vadd.f32 0.0, %v225
      %v227 = vpop.f32.mrf.mxu0
      %228 = vmatprep.mubr.f32.mxu0 %v156
      %229 = vmatmul.mubr.f32.gmra.mxu0 %v155
      %v230 = vpop.f32.mrf.mxu0
      %v231 = vadd.f32 0.0, %v230
      %v232 = vpop.f32.mrf.mxu0
      %233 = vdwg.mxu0
      %v234 = vadd.f32 %v157, %v226
      %v235 = vadd.f32 %v158, %v231
      %vm236 = vcmask 105472
      %237 = vst.msk [vmem:[%s144] sm:$0xff] %vm236, %v234
      %vm238 = vcmask 102400
      %239 = vst.msk [vmem:[%s144 + $0x8] sm:$0x1f] %vm238, %v235
      %p240 = scmp.lt.s32.totalorder %s16, 1
      %s241 = scalar_select %p240, %s16, 1
      %s242 = smul.addr %s241, 2
      %s243 = smul.addr %s242, 8
      %s244 = scalar_lea.vmem %s1, %s243
      // Predicated region
      $region29: #{tpu_custom_call.1} parent=23 // pred_check
        %p245 = pneg %p70
      $region30: #{tpu_custom_call.1} parent=23 // pred_check_branch
        %247 = sbr.rel (%p245) target = $region32
      $region31: #{tpu_custom_call.1} parent=23 // pred_region
        _
      $region32: #{tpu_custom_call.1} parent=23 // pred_fallthru
        _
    $region24: #{tpu_custom_call.1} parent=5 // pred_fallthru
      _
    %p248 = scmp.le.s32.totalorder 2, %s7
    // Predicated region
    $region33: #{tpu_custom_call.1} parent=5 // pred_check
      %p249 = pneg %p248
    $region34: #{tpu_custom_call.1} parent=5 // pred_check_branch
      %251 = sbr.rel (%p249) target = $region36
    $region35: #{tpu_custom_call.1} parent=5 // pred_region
      %s252 = ssub.s32 %s7, 2
      // Predicated region
      $region37: #{tpu_custom_call.1} parent=35 // pred_check
        %p253 = pneg %p76
      $region38: #{tpu_custom_call.1} parent=35 // pred_check_branch
        %255 = sbr.rel (%p253) target = $region40
      $region39: #{tpu_custom_call.1} parent=35 // pred_region
        %p256 = scmp.lt.s32.totalorder %s18, 1
        %s257 = scalar_select %p256, %s18, 1
        %s258 = smul.addr %s257, 2
        %s259 = smul.addr %s258, 8
        %s260 = scalar_lea.vmem %s1, %s259
      $region40: #{tpu_custom_call.1} parent=35 // pred_fallthru
        _
    $region36: #{tpu_custom_call.1} parent=5 // pred_fallthru
      _
  $region6: #{tpu_custom_call.1} parent=0 // loop_footer
    %s11 = sadd.s32 1, %s7
  $region7: #{tpu_custom_call.1} parent=0 // loop_footer_branch
    %6 = sbr.rel target = $region3
  $region8: #{tpu_custom_call.1} parent=0 // loop_exit
    _

</llo_original>
